<compile_context>
chip_gen: v5e
topology: v5e:2x2
jax: 0.10.0
libtpu: 0.0.40
codegen_flags: <defaults>
</compile_context>

<pallas_src>
import functools

import jax
import jax.numpy as jnp
from jax.experimental import pallas as pl
from jax.experimental.pallas import tpu as pltpu

LANE = 128
SUBLANE = 8
NEG_LOGIT = -1e30  # bias fill for padded output columns -> exp underflows to 0


def _round_up(n, m):
    return ((n + m - 1) // m) * m


def _num_tensorcores():
    """Best-effort TensorCore count (v7x has 2); default 1 on failure."""
    try:
        info = pltpu.get_tpu_info()
    except Exception:
        return 1
    for attr in ("num_cores", "core_count", "num_tensorcores", "tensor_cores_per_chip"):
        n = getattr(info, attr, None)
        if isinstance(n, int) and n > 0:
            return n
    return 1


def _mlp_kernel(x_ref, w1_ref, b1_ref, w2_ref, b2_ref, w3_ref, b3_ref, o_ref,
                *, num_outputs):
    x = x_ref[...]  # already in compute dtype (f32 or bf16), cast once in wrapper

    # fc1 + LeakyReLU(0.05); MXU accumulates in f32.
    h1 = jnp.dot(x, w1_ref[...], preferred_element_type=jnp.float32) + b1_ref[...]
    h1 = jnp.maximum(h1, 0.05 * h1)

    # fc2 + LeakyReLU(0.05)
    h2 = jnp.dot(h1.astype(w2_ref.dtype), w2_ref[...],
                 preferred_element_type=jnp.float32) + b2_ref[...]
    h2 = jnp.maximum(h2, 0.05 * h2)

    # fc3 + stable Softmax(dim=-1). Padded output lanes carry bias -1e30 -> exp == 0,
    # so they contribute nothing to the denominator.
    logits = jnp.dot(h2.astype(w3_ref.dtype), w3_ref[...],
                     preferred_element_type=jnp.float32) + b3_ref[...]
    m = jnp.max(logits, axis=-1, keepdims=True)
    e = jnp.exp(logits - m)
    denom = jnp.sum(e, axis=-1, keepdims=True)
    probs = e / denom  # exact normalization: rows sum to 1 to f32 precision

    # Narrow store: only the real output columns go back to HBM.
    o_ref[...] = probs[:, :num_outputs].astype(o_ref.dtype)


def init_params(key, num_inputs, num_outputs):
    """Deterministic init mimicking nn.Linear default (uniform +/- 1/sqrt(fan_in))."""
    hidden = 2 * num_inputs + 1
    keys = jax.random.split(key, 6)

    def linear(kw, kb, fan_in, fan_out):
        bound = 1.0 / jnp.sqrt(jnp.float32(fan_in))
        w = jax.random.uniform(kw, (fan_in, fan_out), jnp.float32, -bound, bound)
        b = jax.random.uniform(kb, (1, fan_out), jnp.float32, -bound, bound)
        return w, b

    w1, b1 = linear(keys[0], keys[1], num_inputs, hidden)
    w2, b2 = linear(keys[2], keys[3], hidden, hidden)
    w3, b3 = linear(keys[4], keys[5], hidden, num_outputs)
    return {"w1": w1, "b1": b1, "w2": w2, "b2": b2, "w3": w3, "b3": b3}


def pad_and_cast_params(params, *, compute_dtype=jnp.float32):
    """One-time padding + optional bf16 cast of the weights.

    * in-features: rounded up only to the 8-sublane multiple (no 128-lane blowup).
    * hidden: rounded up to 128 lanes (dense vregs / unmasked stores).
    * out-features: rounded up to 128 lanes for the in-kernel compute; padded
      b3 entries are -1e30 so padded logits vanish under softmax. Biases stay f32.
    Zero-padded weight rows/cols contribute nothing. bf16 is fine on every TPU
    generation (MXU is bf16-native even on v5e); accumulation stays f32.
    """
    w1, b1, w2, b2, w3, b3 = (params[k] for k in ("w1", "b1", "w2", "b2", "w3", "b3"))
    nin, hid = w1.shape
    nout = w3.shape[1]
    nin_p = _round_up(nin, SUBLANE)
    hid_p = _round_up(hid, LANE)
    out_p = _round_up(nout, LANE)

    def pad_w(w, rows, cols):
        r, c = w.shape
        return jnp.pad(w, ((0, rows - r), (0, cols - c))).astype(compute_dtype)

    def pad_b(b, cols, fill=0.0):
        return jnp.pad(b, ((0, 0), (0, cols - b.shape[1])),
                       constant_values=fill).astype(jnp.float32)

    return {
        "w1": pad_w(w1, nin_p, hid_p), "b1": pad_b(b1, hid_p),
        "w2": pad_w(w2, hid_p, hid_p), "b2": pad_b(b2, hid_p),
        "w3": pad_w(w3, hid_p, out_p), "b3": pad_b(b3, out_p, fill=NEG_LOGIT),
        "num_inputs": nin, "num_outputs": nout,
    }


def mlp_forward(x, pp, *, batch_tile=None):
    """Run the full MLP forward inside one Pallas kernel.

    x:  (B, num_inputs) float32
    pp: padded/cast params from pad_and_cast_params().
    Returns (B, num_outputs) float32 softmax probabilities.
    """
    B, nin = x.shape
    nin_p = pp["w1"].shape[0]
    num_outputs = pp["num_outputs"]
    compute_dtype = pp["w1"].dtype
    assert nin == pp["num_inputs"]

    # Batch tile: multiple of 8, capped at 1024.  Only halve the tile to create
    # extra grid steps on multi-TensorCore parts (>= 2 steps per core); on
    # single-core chips extra steps are pure per-step overhead.
    cores = _num_tensorcores()
    if batch_tile is None:
        tb = min(1024, _round_up(B, SUBLANE))
        if cores > 1:
            target_steps = 2 * cores
            while _round_up(B, tb) // tb < target_steps and tb >= 2 * SUBLANE:
                tb = _round_up(tb // 2, SUBLANE)
    else:
        tb = _round_up(batch_tile, SUBLANE)
    B_pad = _round_up(B, tb)
    grid = (B_pad // tb,)

    # Cast once; pad batch/feature dims only if actually needed (no extra HBM
    # round trip in the common aligned case).
    x_c = x.astype(compute_dtype)
    if B_pad != B or nin_p != nin:
        x_in = jnp.zeros((B_pad, nin_p), compute_dtype).at[:B, :nin].set(x_c)
    else:
        x_in = x_c

    full = lambda arr: pl.BlockSpec(arr.shape, lambda i: (0, 0))

    kernel = functools.partial(_mlp_kernel, num_outputs=num_outputs)

    out = pl.pallas_call(
        kernel,
        out_shape=jax.ShapeDtypeStruct((B_pad, num_outputs), jnp.float32),
        grid_spec=pltpu.PrefetchScalarGridSpec(
            num_scalar_prefetch=0,
            grid=grid,
            in_specs=[
                pl.BlockSpec((tb, nin_p), lambda i: (i, 0)),  # x tile, narrow lanes
                full(pp["w1"]), full(pp["b1"]),
                full(pp["w2"]), full(pp["b2"]),
                full(pp["w3"]), full(pp["b3"]),
            ],
            out_specs=pl.BlockSpec((tb, num_outputs), lambda i: (i, 0)),
        ),
        compiler_params=pltpu.CompilerParams(
            dimension_semantics=("parallel",)),
    )(x_in, pp["w1"], pp["b1"], pp["w2"], pp["b2"], pp["w3"], pp["b3"])

    return out[:B]


def mlp_reference(x, p):
    leaky = lambda v: jnp.where(v >= 0, v, 0.05 * v)
    h1 = leaky(x @ p["w1"] + p["b1"])
    h2 = leaky(h1 @ p["w2"] + p["b2"])
    return jax.nn.softmax(h2 @ p["w3"] + p["b3"], axis=-1)


if __name__ == "__main__":
    num_inputs = 16
    num_outputs = 4
    batch = 8

    key = jax.random.PRNGKey(0)
    k_param, k_x = jax.random.split(key)
    params = init_params(k_param, num_inputs, num_outputs)
    x = jax.random.normal(k_x, (batch, num_inputs), jnp.float32)

    ref = mlp_reference(x, params)

    # f32 MXU path (default).
    pp_f32 = pad_and_cast_params(params, compute_dtype=jnp.float32)
    out = jax.block_until_ready(mlp_forward(x, pp_f32))
    assert out.shape == (batch, num_outputs)
    assert jnp.allclose(out, ref, atol=5e-3, rtol=5e-3)
    assert jnp.allclose(jnp.sum(out, axis=-1), 1.0, atol=1e-3)

    # bf16 matmul path (f32 accumulation) -- valid on v5e/v6e/v7x; looser tolerance.
    pp_bf16 = pad_and_cast_params(params, compute_dtype=jnp.bfloat16)
    out_bf16 = jax.block_until_ready(mlp_forward(x, pp_bf16))
    assert out_bf16.shape == (batch, num_outputs)
    assert jnp.allclose(out_bf16, ref, atol=3e-2, rtol=3e-2)
    assert jnp.allclose(jnp.sum(out_bf16, axis=-1), 1.0, atol=1e-3)

    print("KERNEL_OK")
</pallas_src>

<mosaic_0001>
module attributes {stable_mosaic.version = 11 : i64} {
  func.func @_mlp_kernel(%arg0: i32, %arg1: memref<8x16xf32, #tpu.memory_space<vmem>>, %arg2: memref<16x128xf32, #tpu.memory_space<vmem>>, %arg3: memref<1x128xf32, #tpu.memory_space<vmem>>, %arg4: memref<128x128xf32, #tpu.memory_space<vmem>>, %arg5: memref<1x128xf32, #tpu.memory_space<vmem>>, %arg6: memref<128x128xf32, #tpu.memory_space<vmem>>, %arg7: memref<1x128xf32, #tpu.memory_space<vmem>>, %arg8: memref<8x4xf32, #tpu.memory_space<vmem>>) attributes {dimension_semantics = [#tpu.dimension_semantics<parallel>], iteration_bounds = array<i64: 1>, scalar_prefetch = 0 : i64, scratch_operands = 0 : i64, tpu.core_type = #tpu.core_type<tc>, window_params = [{transform_indices = @transform_0, window_bounds = array<i64: 8, 16>}, {pipeline_mode = #tpu.pipeline_mode<synchronous>, transform_indices = @transform_1, window_bounds = array<i64: 16, 128>}, {pipeline_mode = #tpu.pipeline_mode<synchronous>, transform_indices = @transform_2, window_bounds = array<i64: 1, 128>}, {pipeline_mode = #tpu.pipeline_mode<synchronous>, transform_indices = @transform_3, window_bounds = array<i64: 128, 128>}, {pipeline_mode = #tpu.pipeline_mode<synchronous>, transform_indices = @transform_4, window_bounds = array<i64: 1, 128>}, {pipeline_mode = #tpu.pipeline_mode<synchronous>, transform_indices = @transform_5, window_bounds = array<i64: 128, 128>}, {pipeline_mode = #tpu.pipeline_mode<synchronous>, transform_indices = @transform_6, window_bounds = array<i64: 1, 128>}, {transform_indices = @transform_7, window_bounds = array<i64: 8, 4>}]} {
    %c0 = arith.constant 0 : index
    %c0_0 = arith.constant 0 : index
    %0 = vector.load %arg1[%c0, %c0_0] : memref<8x16xf32, #tpu.memory_space<vmem>>, vector<8x16xf32>
    %c0_1 = arith.constant 0 : index
    %c0_2 = arith.constant 0 : index
    %1 = vector.load %arg2[%c0_1, %c0_2] : memref<16x128xf32, #tpu.memory_space<vmem>>, vector<16x128xf32>
    %cst = arith.constant dense<0.000000e+00> : vector<8x128xf32>
    %2 = tpu.matmul %0, %1, %cst {dimension_numbers = #tpu.dot_dimension_numbers<[1], [0], [0], [1], [0, 0, 1, 1], [], []>} : vector<8x16xf32>, vector<16x128xf32>, vector<8x128xf32> -> vector<8x128xf32>
    %c0_3 = arith.constant 0 : index
    %c0_4 = arith.constant 0 : index
    %3 = vector.load %arg3[%c0_3, %c0_4] : memref<1x128xf32, #tpu.memory_space<vmem>>, vector<1x128xf32>
    %4 = vector.broadcast %3 : vector<1x128xf32> to vector<8x128xf32>
    %5 = arith.addf %2, %4 : vector<8x128xf32>
    %cst_5 = arith.constant 5.000000e-02 : f32
    %6 = vector.broadcast %cst_5 : f32 to vector<8x128xf32>
    %7 = arith.mulf %6, %5 : vector<8x128xf32>
    %8 = arith.maximumf %5, %7 : vector<8x128xf32>
    %c0_6 = arith.constant 0 : index
    %c0_7 = arith.constant 0 : index
    %9 = vector.load %arg4[%c0_6, %c0_7] : memref<128x128xf32, #tpu.memory_space<vmem>>, vector<128x128xf32>
    %cst_8 = arith.constant dense<0.000000e+00> : vector<8x128xf32>
    %10 = tpu.matmul %8, %9, %cst_8 {dimension_numbers = #tpu.dot_dimension_numbers<[1], [0], [0], [1], [0, 0, 1, 1], [], []>} : vector<8x128xf32>, vector<128x128xf32>, vector<8x128xf32> -> vector<8x128xf32>
    %c0_9 = arith.constant 0 : index
    %c0_10 = arith.constant 0 : index
    %11 = vector.load %arg5[%c0_9, %c0_10] : memref<1x128xf32, #tpu.memory_space<vmem>>, vector<1x128xf32>
    %12 = vector.broadcast %11 : vector<1x128xf32> to vector<8x128xf32>
    %13 = arith.addf %10, %12 : vector<8x128xf32>
    %cst_11 = arith.constant 5.000000e-02 : f32
    %14 = vector.broadcast %cst_11 : f32 to vector<8x128xf32>
    %15 = arith.mulf %14, %13 : vector<8x128xf32>
    %16 = arith.maximumf %13, %15 : vector<8x128xf32>
    %c0_12 = arith.constant 0 : index
    %c0_13 = arith.constant 0 : index
    %17 = vector.load %arg6[%c0_12, %c0_13] : memref<128x128xf32, #tpu.memory_space<vmem>>, vector<128x128xf32>
    %cst_14 = arith.constant dense<0.000000e+00> : vector<8x128xf32>
    %18 = tpu.matmul %16, %17, %cst_14 {dimension_numbers = #tpu.dot_dimension_numbers<[1], [0], [0], [1], [0, 0, 1, 1], [], []>} : vector<8x128xf32>, vector<128x128xf32>, vector<8x128xf32> -> vector<8x128xf32>
    %c0_15 = arith.constant 0 : index
    %c0_16 = arith.constant 0 : index
    %19 = vector.load %arg7[%c0_15, %c0_16] : memref<1x128xf32, #tpu.memory_space<vmem>>, vector<1x128xf32>
    %20 = vector.broadcast %19 : vector<1x128xf32> to vector<8x128xf32>
    %21 = arith.addf %18, %20 : vector<8x128xf32>
    %cst_17 = arith.constant dense<0xFF800000> : vector<8xf32>
    %22 = vector.multi_reduction <maximumf>, %21, %cst_17 [1] : vector<8x128xf32> to vector<8xf32>
    %23 = vector.shape_cast %22 : vector<8xf32> to vector<8x1xf32>
    %24 = vector.broadcast %23 : vector<8x1xf32> to vector<8x128xf32>
    %25 = arith.subf %21, %24 : vector<8x128xf32>
    %26 = math.exp %25 : vector<8x128xf32>
    %cst_18 = arith.constant dense<0.000000e+00> : vector<8xf32>
    %27 = vector.multi_reduction <add>, %26, %cst_18 [1] : vector<8x128xf32> to vector<8xf32>
    %28 = vector.shape_cast %27 : vector<8xf32> to vector<8x1xf32>
    %29 = vector.broadcast %28 : vector<8x1xf32> to vector<8x128xf32>
    %30 = arith.divf %26, %29 : vector<8x128xf32>
    %31 = vector.extract_strided_slice %30 {offsets = [0, 0], sizes = [8, 4], strides = [1, 1]} : vector<8x128xf32> to vector<8x4xf32>
    %c0_19 = arith.constant 0 : index
    %c0_20 = arith.constant 0 : index
    %32 = vector.load %arg8[%c0_19, %c0_20] : memref<8x4xf32, #tpu.memory_space<vmem>>, vector<8x4xf32>
    tpu.vector_store %arg8[%c0_19, %c0_20], %31 {strides = array<i32>} : memref<8x4xf32, #tpu.memory_space<vmem>>, vector<8x4xf32>,
    return
  }
  func.func @transform_0(%arg0: i32) -> (i32, i32) {
    %c0_i32 = arith.constant 0 : i32
    %c0_i32_0 = arith.constant 0 : i32
    return %arg0, %c0_i32 : i32, i32
  }
  func.func @transform_1(%arg0: i32) -> (i32, i32) {
    %c0_i32 = arith.constant 0 : i32
    %c0_i32_0 = arith.constant 0 : i32
    %c0_i32_1 = arith.constant 0 : i32
    return %c0_i32, %c0_i32_0 : i32, i32
  }
  func.func @transform_2(%arg0: i32) -> (i32, i32) {
    %c0_i32 = arith.constant 0 : i32
    %c0_i32_0 = arith.constant 0 : i32
    %c0_i32_1 = arith.constant 0 : i32
    return %c0_i32, %c0_i32_0 : i32, i32
  }
  func.func @transform_3(%arg0: i32) -> (i32, i32) {
    %c0_i32 = arith.constant 0 : i32
    %c0_i32_0 = arith.constant 0 : i32
    %c0_i32_1 = arith.constant 0 : i32
    return %c0_i32, %c0_i32_0 : i32, i32
  }
  func.func @transform_4(%arg0: i32) -> (i32, i32) {
    %c0_i32 = arith.constant 0 : i32
    %c0_i32_0 = arith.constant 0 : i32
    %c0_i32_1 = arith.constant 0 : i32
    return %c0_i32, %c0_i32_0 : i32, i32
  }
  func.func @transform_5(%arg0: i32) -> (i32, i32) {
    %c0_i32 = arith.constant 0 : i32
    %c0_i32_0 = arith.constant 0 : i32
    %c0_i32_1 = arith.constant 0 : i32
    return %c0_i32, %c0_i32_0 : i32, i32
  }
  func.func @transform_6(%arg0: i32) -> (i32, i32) {
    %c0_i32 = arith.constant 0 : i32
    %c0_i32_0 = arith.constant 0 : i32
    %c0_i32_1 = arith.constant 0 : i32
    return %c0_i32, %c0_i32_0 : i32, i32
  }
  func.func @transform_7(%arg0: i32) -> (i32, i32) {
    %c0_i32 = arith.constant 0 : i32
    %c0_i32_0 = arith.constant 0 : i32
    return %arg0, %c0_i32 : i32, i32
  }
}

</mosaic_0001>

<llo_original>
// kernel: tpu_custom_call.1
$region0: #{tpu_custom_call.1}
  #allocation0 [shape = 'u32[]', space=smem, size = 0x4, offset = 0x4, fixed_abs, tag = 'smem constant byte address 0x4 - core index']
  #allocation1 [shape = 'u32[72,128]{1,0:T(1,128)}', space=vmem, size = 0x9000, scoped, tag = 'internal scratch']
  %s0 = inlined_call_operand.hbm [shape: f32[8,16], index: 0, kind: input, shape index: {}]
  %s1 = inlined_call_operand.hbm [shape: f32[16,128], index: 1, kind: input, shape index: {}]
  %s2 = inlined_call_operand.vmem [shape: f32[1,128], index: 2, kind: input, shape index: {}]
  %s3 = inlined_call_operand.hbm [shape: f32[128,128], index: 3, kind: input, shape index: {}]
  %s4 = inlined_call_operand.vmem [shape: f32[1,128], index: 4, kind: input, shape index: {}]
  %s5 = inlined_call_operand.hbm [shape: f32[128,128], index: 5, kind: input, shape index: {}]
  %s6 = inlined_call_operand.vmem [shape: f32[1,128], index: 6, kind: input, shape index: {}]
  %s7 = inlined_call_operand.vmem [shape: f32[8,4], index: 7, kind: output, shape index: {}]
  %s8 = sld [smem:[#allocation0]]
  $region54: #{tpu_custom_call.1} parent=0
    _
  %s10 = ssub.s32 1, %s8
  %s11 = scalar_select 0, %s10, %s8
  $region1: #{tpu_custom_call.1} parent=0
    #allocation2 [shape = 'u8[4096]{0}', space=vmem, size = 0x1000, scoped, tag = 'input window, operand 0, single buffered']
    #allocation3 [shape = 's32[1]{0}', space=sflag, size = 0x4, scoped, tag = 'scoped memory for tpu_custom_call.1']
    #allocation4 [shape = 'u8[8192]{0}', space=vmem, size = 0x2000, scoped, tag = 'input window, operand 1, single buffered']
    #allocation5 [shape = 's32[1]{0}', space=sflag, size = 0x4, scoped, tag = 'scoped memory for tpu_custom_call.1']
    #allocation6 [shape = 'u8[65536]{0}', space=vmem, size = 0x10000, scoped, tag = 'input window, operand 3, single buffered']
    #allocation7 [shape = 'u8[65536]{0}', space=vmem, size = 0x10000, scoped, tag = 'input window, operand 5, single buffered']
    #allocation8 [shape = 's32[1]{0}', space=sflag, size = 0x4, scoped, tag = 'scoped memory for tpu_custom_call.1']
    %12 = vsyncpa [#allocation3], 0
    %13 = vsyncpa [#allocation5], 0
    %14 = vsyncpa [#allocation8], 0
    // Predicated region
    $region2: #{tpu_custom_call.1} parent=1 // pred_check
      _
    $region3: #{tpu_custom_call.1} parent=1 // pred_check_branch
      %16 = sbr.rel (0) target = $region5
    $region4: #{tpu_custom_call.1} parent=1 // pred_region
      %18 = vsyncadd [#allocation3], 0
      %s20 = sshll.u32 %s0, 4
      %s21 = int_to_ptr.hbm [resolvable:$true] %s20
      %s22 = sshll.u32 [#allocation2], 4
      %s23 = int_to_ptr.vmem [resolvable:$true] %s22
      %25 = dma.hbm_to_vmem [thread:$0]  %s21, 128, %s23, [#allocation3]
    $region5: #{tpu_custom_call.1} parent=1 // pred_fallthru
      _
    // Predicated region
    $region6: #{tpu_custom_call.1} parent=1 // pred_check
      _
    $region7: #{tpu_custom_call.1} parent=1 // pred_check_branch
      %27 = sbr.rel (0) target = $region9
    $region8: #{tpu_custom_call.1} parent=1 // pred_region
      %29 = vsyncadd [#allocation5], 0
      %s30 = sshll.u32 %s1, 4
      %s31 = int_to_ptr.hbm [resolvable:$true] %s30
      %s32 = sshll.u32 [#allocation4], 4
      %s33 = int_to_ptr.vmem [resolvable:$true] %s32
      %38 = dma.hbm_to_vmem [thread:$0]  %s31, 256, %s33, [#allocation5], 128, 128, 8
    $region9: #{tpu_custom_call.1} parent=1 // pred_fallthru
      _
    // Predicated region
    $region10: #{tpu_custom_call.1} parent=1 // pred_check
      _
    $region11: #{tpu_custom_call.1} parent=1 // pred_check_branch
      %40 = sbr.rel (0) target = $region13
    $region12: #{tpu_custom_call.1} parent=1 // pred_region
      _
    $region13: #{tpu_custom_call.1} parent=1 // pred_fallthru
      _
    // Predicated region
    $region14: #{tpu_custom_call.1} parent=1 // pred_check
      _
    $region15: #{tpu_custom_call.1} parent=1 // pred_check_branch
      %42 = sbr.rel (0) target = $region17
    $region16: #{tpu_custom_call.1} parent=1 // pred_region
      %44 = vsyncadd [#allocation5], 0
      %s45 = sshll.u32 %s3, 4
      %s46 = int_to_ptr.hbm [resolvable:$true] %s45
      %s47 = sshll.u32 [#allocation6], 4
      %s48 = int_to_ptr.vmem [resolvable:$true] %s47
      %53 = dma.hbm_to_vmem [thread:$0]  %s46, 2048, %s48, [#allocation5], 128, 128, 8
    $region17: #{tpu_custom_call.1} parent=1 // pred_fallthru
      _
    // Predicated region
    $region18: #{tpu_custom_call.1} parent=1 // pred_check
      _
    $region19: #{tpu_custom_call.1} parent=1 // pred_check_branch
      %55 = sbr.rel (0) target = $region21
    $region20: #{tpu_custom_call.1} parent=1 // pred_region
      _
    $region21: #{tpu_custom_call.1} parent=1 // pred_fallthru
      _
    // Predicated region
    $region22: #{tpu_custom_call.1} parent=1 // pred_check
      _
    $region23: #{tpu_custom_call.1} parent=1 // pred_check_branch
      %57 = sbr.rel (0) target = $region25
    $region24: #{tpu_custom_call.1} parent=1 // pred_region
      %59 = vsyncadd [#allocation8], 0
      %s60 = sshll.u32 %s5, 4
      %s61 = int_to_ptr.hbm [resolvable:$true] %s60
      %s62 = sshll.u32 [#allocation7], 4
      %s63 = int_to_ptr.vmem [resolvable:$true] %s62
      %68 = dma.hbm_to_vmem [thread:$0]  %s61, 2048, %s63, [#allocation8], 128, 128, 8
    $region25: #{tpu_custom_call.1} parent=1 // pred_fallthru
      _
    // Predicated region
    $region26: #{tpu_custom_call.1} parent=1 // pred_check
      _
    $region27: #{tpu_custom_call.1} parent=1 // pred_check_branch
      %70 = sbr.rel (0) target = $region29
    $region28: #{tpu_custom_call.1} parent=1 // pred_region
      _
    $region29: #{tpu_custom_call.1} parent=1 // pred_fallthru
      _
    // Predicated region
    $region30: #{tpu_custom_call.1} parent=1 // pred_check
      _
    $region31: #{tpu_custom_call.1} parent=1 // pred_check_branch
      %72 = sbr.rel (0) target = $region33
    $region32: #{tpu_custom_call.1} parent=1 // pred_region
      %74 = dma.done [#allocation3], 128
    $region33: #{tpu_custom_call.1} parent=1 // pred_fallthru
      _
    // Predicated region
    $region34: #{tpu_custom_call.1} parent=1 // pred_check
      _
    $region35: #{tpu_custom_call.1} parent=1 // pred_check_branch
      %76 = sbr.rel (0) target = $region37
    $region36: #{tpu_custom_call.1} parent=1 // pred_region
      %78 = dma.done [#allocation5], 256
    $region37: #{tpu_custom_call.1} parent=1 // pred_fallthru
      _
    // Predicated region
    $region38: #{tpu_custom_call.1} parent=1 // pred_check
      _
    $region39: #{tpu_custom_call.1} parent=1 // pred_check_branch
      %80 = sbr.rel (0) target = $region41
    $region40: #{tpu_custom_call.1} parent=1 // pred_region
      %82 = dma.done [#allocation5], 2048
    $region41: #{tpu_custom_call.1} parent=1 // pred_fallthru
      _
    // Predicated region
    $region42: #{tpu_custom_call.1} parent=1 // pred_check
      _
    $region43: #{tpu_custom_call.1} parent=1 // pred_check_branch
      %84 = sbr.rel (0) target = $region45
    $region44: #{tpu_custom_call.1} parent=1 // pred_region
      %86 = dma.done [#allocation8], 2048
    $region45: #{tpu_custom_call.1} parent=1 // pred_fallthru
      _
    %v87 = vld [vmem:[#allocation2] sm:$0xff]
    %v88 = vld [vmem:[#allocation4] sm:$0xff]
    %v89 = vld [vmem:[#allocation4 + $0x8] sm:$0xff]
    %v90 = vld [vmem:[%s2] sm:$0x1]
    %v92 = vperm.slane %v90, 0
    %vm94 = vcmask 130048
    %v96 = vsel %vm94, %v87, 0
    %98 = vmatpush.msra.mxu0 0.0
    %99 = vmatpush.msra.mxu0 0.0
    %100 = vmatpush.msra.mxu0 0.0
    %101 = vmatpush.msra.mxu0 0.0
    %102 = vmatpush.msra.mxu0 0.0
    %103 = vmatpush.msra.mxu0 0.0
    %104 = vmatpush.msra.mxu0 0.0
    %105 = vmatpush.msra.mxu0 0.0
    %106 = vmatpush.msra.mxu0 0.0
    %107 = vmatpush.msra.mxu0 0.0
    %108 = vmatpush.msra.mxu0 0.0
    %109 = vmatpush.msra.mxu0 0.0
    %110 = vmatpush.msra.mxu0 0.0
    %111 = vmatpush.msra.mxu0 0.0
    %112 = vmatpush.msra.mxu0 %v89
    %113 = vmatpush.msra.mxu0 %v88
    %114 = vmatmul.f32.gmra.mxu0 %v96
    %v115 = vpop.f32.mrf.mxu0
    %v116 = vadd.f32 %v92, %v115
    %117 = vdwg.mxu0
    %v118 = vmul.f32 %v116, 0.05
    %v119 = vmax.f32 %v116, %v118
    %v120 = vld [vmem:[#allocation6] sm:$0xff]
    %v121 = vld [vmem:[#allocation6 + $0x8] sm:$0xff]
    %v122 = vld [vmem:[#allocation6 + $0x10] sm:$0xff]
    %v123 = vld [vmem:[#allocation6 + $0x18] sm:$0xff]
    %v124 = vld [vmem:[#allocation6 + $0x20] sm:$0xff]
    %v125 = vld [vmem:[#allocation6 + $0x28] sm:$0xff]
    %v126 = vld [vmem:[#allocation6 + $0x30] sm:$0xff]
    %v127 = vld [vmem:[#allocation6 + $0x38] sm:$0xff]
    %v128 = vld [vmem:[#allocation6 + $0x40] sm:$0xff]
    %v129 = vld [vmem:[#allocation6 + $0x48] sm:$0xff]
    %v130 = vld [vmem:[#allocation6 + $0x50] sm:$0xff]
    %v131 = vld [vmem:[#allocation6 + $0x58] sm:$0xff]
    %v132 = vld [vmem:[#allocation6 + $0x60] sm:$0xff]
    %v133 = vld [vmem:[#allocation6 + $0x68] sm:$0xff]
    %v134 = vld [vmem:[#allocation6 + $0x70] sm:$0xff]
    %v135 = vld [vmem:[#allocation6 + $0x78] sm:$0xff]
    %v136 = vld [vmem:[%s4] sm:$0x1]
    %v138 = vperm.slane %v136, 0
    %140 = vmatpush.msra.mxu0 %v135
    %141 = vmatpush.msra.mxu0 %v134
    %142 = vmatpush.msra.mxu0 %v133
    %143 = vmatpush.msra.mxu0 %v132
    %144 = vmatpush.msra.mxu0 %v131
    %145 = vmatpush.msra.mxu0 %v130
    %146 = vmatpush.msra.mxu0 %v129
    %147 = vmatpush.msra.mxu0 %v128
    %148 = vmatpush.msra.mxu0 %v127
    %149 = vmatpush.msra.mxu0 %v126
    %150 = vmatpush.msra.mxu0 %v125
    %151 = vmatpush.msra.mxu0 %v124
    %152 = vmatpush.msra.mxu0 %v123
    %153 = vmatpush.msra.mxu0 %v122
    %154 = vmatpush.msra.mxu0 %v121
    %155 = vmatpush.msra.mxu0 %v120
    %156 = vmatmul.f32.gmra.mxu0 %v119
    %v157 = vpop.f32.mrf.mxu0
    %v158 = vadd.f32 %v138, %v157
    %159 = vdwg.mxu0
    %v160 = vmul.f32 %v158, 0.05
    %v161 = vmax.f32 %v158, %v160
    %v162 = vld [vmem:[#allocation7] sm:$0xff]
    %v163 = vld [vmem:[#allocation7 + $0x8] sm:$0xff]
    %v164 = vld [vmem:[#allocation7 + $0x10] sm:$0xff]
    %v165 = vld [vmem:[#allocation7 + $0x18] sm:$0xff]
    %v166 = vld [vmem:[#allocation7 + $0x20] sm:$0xff]
    %v167 = vld [vmem:[#allocation7 + $0x28] sm:$0xff]
    %v168 = vld [vmem:[#allocation7 + $0x30] sm:$0xff]
    %v169 = vld [vmem:[#allocation7 + $0x38] sm:$0xff]
    %v170 = vld [vmem:[#allocation7 + $0x40] sm:$0xff]
    %v171 = vld [vmem:[#allocation7 + $0x48] sm:$0xff]
    %v172 = vld [vmem:[#allocation7 + $0x50] sm:$0xff]
    %v173 = vld [vmem:[#allocation7 + $0x58] sm:$0xff]
    %v174 = vld [vmem:[#allocation7 + $0x60] sm:$0xff]
    %v175 = vld [vmem:[#allocation7 + $0x68] sm:$0xff]
    %v176 = vld [vmem:[#allocation7 + $0x70] sm:$0xff]
    %v177 = vld [vmem:[#allocation7 + $0x78] sm:$0xff]
    %v178 = vld [vmem:[%s6] sm:$0x1]
    %v180 = vperm.slane %v178, 0
    %182 = vmatpush.msra.mxu0 %v177
    %183 = vmatpush.msra.mxu0 %v176
    %184 = vmatpush.msra.mxu0 %v175
    %185 = vmatpush.msra.mxu0 %v174
    %186 = vmatpush.msra.mxu0 %v173
    %187 = vmatpush.msra.mxu0 %v172
    %188 = vmatpush.msra.mxu0 %v171
    %189 = vmatpush.msra.mxu0 %v170
    %190 = vmatpush.msra.mxu0 %v169
    %191 = vmatpush.msra.mxu0 %v168
    %192 = vmatpush.msra.mxu0 %v167
    %193 = vmatpush.msra.mxu0 %v166
    %194 = vmatpush.msra.mxu0 %v165
    %195 = vmatpush.msra.mxu0 %v164
    %196 = vmatpush.msra.mxu0 %v163
    %197 = vmatpush.msra.mxu0 %v162
    %198 = vmatmul.f32.gmra.mxu0 %v161
    %v199 = vpop.f32.mrf.mxu0
    %v200 = vadd.f32 %v180, %v199
    %201 = vdwg.mxu0
    %202 = vmax.xlane.f32.xlu0 %v200
    %v203 = vpop.xlane.xlu0 %202
    %v204 = vsub.f32 %v200, %v203
    %v205 = vmul.f32 %v204, 1.442695
    %v206 = vpow.pop %v205
    %207 = vadd.xlane.f32.xlu0 %v206
    %v208 = vpop.xlane.xlu0 %207
    %v209 = vrcp.pop %v208
    %v210 = vmul.f32 %v208, %v209
    %v211 = vsub.f32 1.0, %v210
    %v212 = vmul.f32 %v209, %v211
    %v213 = vadd.f32 %v209, %v212
    %vm214 = vweird.f32 %v208
    %vm215 = vweird.f32 %v209
    %vm216 = vmor %vm214, %vm215
    %v217 = vsel %vm216, %v209, %v213
    %v218 = vand.u32 2147483647, %v208
    %vm219 = vcmp.eq.f32.partialorder %v218, 8.507059e+37
    %v220 = vand.u32 %v208, 2147483648
    %v221 = vor.u32 1.1754944e-38, %v220
    %v222 = vsel %vm219, %v221, %v217
    %v223 = vmul.f32 %v206, %v222
    %vm224 = vcmask 31744
    %225 = vst.msk [vmem:[%s7] sm:$0xff] %vm224, %v223
    // Predicated region
    $region46: #{tpu_custom_call.1} parent=1 // pred_check
      _
    $region47: #{tpu_custom_call.1} parent=1 // pred_check_branch
      %227 = sbr.rel (0) target = $region49
    $region48: #{tpu_custom_call.1} parent=1 // pred_region
      _
    $region49: #{tpu_custom_call.1} parent=1 // pred_fallthru
      _
    // Predicated region
    $region50: #{tpu_custom_call.1} parent=1 // pred_check
      _
    $region51: #{tpu_custom_call.1} parent=1 // pred_check_branch
      %229 = sbr.rel (0) target = $region53
    $region52: #{tpu_custom_call.1} parent=1 // pred_region
      _
    $region53: #{tpu_custom_call.1} parent=1 // pred_fallthru
      _
    %230 = vsyncpa [#allocation3], 1
    %231 = vsyncpa [#allocation5], 1
    %232 = vsyncpa [#allocation8], 1

</llo_original>
